<compile_context>
chip_gen: v7x
topology: tpu7x:2x2x1
jax: 0.10.0
libtpu: 0.0.40
codegen_flags: <defaults>
</compile_context>

<pallas_src>
import math

import jax
import jax.numpy as jnp
from jax.experimental import pallas as pl
from jax.experimental.pallas import tpu as pltpu


# ----------------------------------------------------------------------------
# Kernel 1: HtH = |FFT2(x)|^2 via DFT matmuls (per batch sample).
# ----------------------------------------------------------------------------
def _fft_mag2_kernel(x_ref, fr_ref, fi_ref, o_ref):
    x = x_ref[0]                                   # (128, 128) real
    fr = fr_ref[...]                               # cos part of DFT matrix
    fi = fi_ref[...]                               # -sin part of DFT matrix
    a = jnp.dot(fr, x, preferred_element_type=jnp.float32)
    b = jnp.dot(fi, x, preferred_element_type=jnp.float32)
    re = (jnp.dot(a, fr, preferred_element_type=jnp.float32)
          - jnp.dot(b, fi, preferred_element_type=jnp.float32))
    im = (jnp.dot(a, fi, preferred_element_type=jnp.float32)
          + jnp.dot(b, fr, preferred_element_type=jnp.float32))
    o_ref[0] = re * re + im * im


def fft_mag2(x, fr, fi):
    n = x.shape[0]
    s = 128
    return pl.pallas_call(
        _fft_mag2_kernel,
        out_shape=jax.ShapeDtypeStruct((n, s, s), jnp.float32),
        grid=(n,),
        in_specs=[
            pl.BlockSpec((1, s, s), lambda b: (b, 0, 0)),
            pl.BlockSpec((s, s), lambda b: (0, 0)),
            pl.BlockSpec((s, s), lambda b: (0, 0)),
        ],
        out_specs=pl.BlockSpec((1, s, s), lambda b: (b, 0, 0)),
        compiler_params=pltpu.CompilerParams(
            dimension_semantics=("parallel",),
            vmem_limit_bytes=32 * 1024 * 1024,
        ),
        cost_estimate=pl.CostEstimate(
            flops=6 * 2 * s * s * s * n,
            transcendentals=0,
            bytes_accessed=(2 * n * s * s + 2 * s * s) * 4,
        ),
    )(x, fr, fi)


# ----------------------------------------------------------------------------
# Kernel 2: Conv3x3 (as matmul over im2col) + folded BatchNorm + ReLU.
# ----------------------------------------------------------------------------
def _conv_bn_relu_kernel(p_ref, w_ref, s_ref, t_ref, o_ref):
    p = p_ref[0]                                                    # (K, H*W)
    y = jnp.dot(w_ref[...], p, preferred_element_type=jnp.float32)  # (C_out, H*W)
    y = s_ref[...] * y + t_ref[...]                                 # folded conv-bias + BN affine
    o_ref[0] = jnp.maximum(y, 0.0)                                  # ReLU


def conv_bn_relu(patches, w_mat, scale, shift):
    n, k, hw = patches.shape
    c_out = w_mat.shape[0]
    return pl.pallas_call(
        _conv_bn_relu_kernel,
        out_shape=jax.ShapeDtypeStruct((n, c_out, hw), jnp.float32),
        grid=(n,),
        in_specs=[
            pl.BlockSpec((1, k, hw), lambda b: (b, 0, 0)),
            pl.BlockSpec((c_out, k), lambda b: (0, 0)),
            pl.BlockSpec((c_out, 1), lambda b: (0, 0)),
            pl.BlockSpec((c_out, 1), lambda b: (0, 0)),
        ],
        out_specs=pl.BlockSpec((1, c_out, hw), lambda b: (b, 0, 0)),
        compiler_params=pltpu.CompilerParams(
            dimension_semantics=("parallel",),
            vmem_limit_bytes=32 * 1024 * 1024,
        ),
        cost_estimate=pl.CostEstimate(
            flops=2 * n * c_out * k * hw,
            transcendentals=0,
            bytes_accessed=(n * k * hw + c_out * k + 2 * c_out + n * c_out * hw) * 4,
        ),
    )(patches, w_mat, scale, shift)


# ----------------------------------------------------------------------------
# Kernel 3: fused MLP head: Linear+ReLU, Linear+ReLU, Linear+Softplus, +1e-6.
# The 1025-wide input is split as (features @ W1a) + (M * w1m) to keep lanes dense.
# ----------------------------------------------------------------------------
def _mlp_kernel(f_ref, m_ref, w1_ref, w1m_ref, b1_ref,
                w2_ref, b2_ref, w3_ref, b3_ref, o_ref):
    f = f_ref[...]                                 # (N, 1024)
    m = m_ref[...]                                 # (N, 1)
    h1 = jnp.dot(f, w1_ref[...], preferred_element_type=jnp.float32)
    h1 = h1 + m * w1m_ref[...] + b1_ref[...]
    h1 = jnp.maximum(h1, 0.0)
    h2 = jnp.dot(h1, w2_ref[...], preferred_element_type=jnp.float32) + b2_ref[...]
    h2 = jnp.maximum(h2, 0.0)
    z = jnp.dot(h2, w3_ref[...], preferred_element_type=jnp.float32) + b3_ref[...]
    # numerically stable softplus: log(1 + exp(z))
    sp = jnp.maximum(z, 0.0) + jnp.log(1.0 + jnp.exp(-jnp.abs(z)))
    o_ref[...] = sp + 1e-6


def mlp_head(feat, m, w1a, w1m, b1, w2, b2, w3, b3):
    n, f_dim = feat.shape
    h = w1a.shape[1]
    o = w3.shape[1]

    def full2(shape):
        return pl.BlockSpec(shape, lambda i: (0, 0))

    return pl.pallas_call(
        _mlp_kernel,
        out_shape=jax.ShapeDtypeStruct((n, o), jnp.float32),
        grid=(1,),
        in_specs=[full2((n, f_dim)), full2((n, 1)),
                  full2((f_dim, h)), full2((1, h)), full2((1, h)),
                  full2((h, h)), full2((1, h)),
                  full2((h, o)), full2((1, o))],
        out_specs=full2((n, o)),
        compiler_params=pltpu.CompilerParams(
            dimension_semantics=("arbitrary",),
            vmem_limit_bytes=32 * 1024 * 1024,
        ),
    )(feat, m, w1a, w1m, b1, w2, b2, w3, b3)


# ----------------------------------------------------------------------------
# jnp-side layout helpers (pure data movement).
# ----------------------------------------------------------------------------
def _maxpool2(x):
    n, c, h, w = x.shape
    return x.reshape(n, c, h // 2, 2, w // 2, 2).max(axis=(3, 5))


def _im2col3x3(x):
    n, c, h, w = x.shape
    xp = jnp.pad(x, ((0, 0), (0, 0), (1, 1), (1, 1)))
    cols = [xp[:, :, dy:dy + h, dx:dx + w] for dy in range(3) for dx in range(3)]
    patches = jnp.stack(cols, axis=2)              # (N, C, 9, H, W)
    return patches.reshape(n, c * 9, h * w)


def _dft_matrices(size=128):
    idx = jnp.arange(size, dtype=jnp.float32)
    ang = (2.0 * math.pi / size) * jnp.outer(idx, idx)
    return jnp.cos(ang), -jnp.sin(ang)


# ----------------------------------------------------------------------------
# Parameters (deterministic, untrained): conv/BN folded to (w_mat, scale, shift).
# ----------------------------------------------------------------------------
def init_params(key, n_iters):
    conv_io = [(4, 1), (4, 4), (8, 4), (8, 8), (16, 8), (16, 16), (16, 16), (16, 16)]
    keys = jax.random.split(key, 2 * len(conv_io) + 6)
    eps = 1e-5
    convs = []
    ki = 0
    for (co, ci) in conv_io:
        w = 0.1 * jax.random.normal(keys[ki], (co, ci, 3, 3), dtype=jnp.float32); ki += 1
        b = 0.1 * jax.random.normal(keys[ki], (co,), dtype=jnp.float32); ki += 1
        # BatchNorm2d inference with default stats: mean=0, var=1, gamma=1, beta=0.
        gamma = jnp.ones((co,), jnp.float32)
        beta = jnp.zeros((co,), jnp.float32)
        mean = jnp.zeros((co,), jnp.float32)
        var = jnp.ones((co,), jnp.float32)
        scale = gamma / jnp.sqrt(var + eps)
        shift = beta + (b - mean) * scale
        convs.append((w.reshape(co, ci * 9), scale.reshape(co, 1), shift.reshape(co, 1)))

    feat_dim = 16 * 8 * 8
    w1t = 0.05 * jax.random.normal(keys[ki], (feat_dim + 1, 64), dtype=jnp.float32); ki += 1
    b1 = 0.05 * jax.random.normal(keys[ki], (64,), dtype=jnp.float32); ki += 1
    w2t = 0.05 * jax.random.normal(keys[ki], (64, 64), dtype=jnp.float32); ki += 1
    b2 = 0.05 * jax.random.normal(keys[ki], (64,), dtype=jnp.float32); ki += 1
    w3t = 0.05 * jax.random.normal(keys[ki], (64, 2 * n_iters), dtype=jnp.float32); ki += 1
    b3 = 0.05 * jax.random.normal(keys[ki], (2 * n_iters,), dtype=jnp.float32); ki += 1

    fr, fi = _dft_matrices(128)
    return {
        "convs": convs,
        "w1a": w1t[:feat_dim, :], "w1m": w1t[feat_dim:, :], "b1": b1.reshape(1, 64),
        "w2": w2t, "b2": b2.reshape(1, 64),
        "w3": w3t, "b3": b3.reshape(1, 2 * n_iters),
        "fr": fr, "fi": fi,
    }


# ----------------------------------------------------------------------------
# Full InitNet forward.
# ----------------------------------------------------------------------------
def init_net_forward(kernel_img, m_scalar, params, n_iters):
    n, _, h, w = kernel_img.shape
    ph1 = (128 - h) // 2
    ph2 = (128 - h) - ph1
    pw1 = (128 - w) // 2
    pw2 = (128 - w) - pw1
    k_pad = jnp.pad(kernel_img.astype(jnp.float32),
                    ((0, 0), (0, 0), (ph1, ph2), (pw1, pw2)))

    hth = fft_mag2(k_pad[:, 0, :, :], params["fr"], params["fi"])   # (N,128,128)
    act = hth[:, None, :, :]                                        # (N,1,128,128)

    for blk in range(4):
        act = _maxpool2(act)
        for j in range(2):
            w_mat, scale, shift = params["convs"][blk * 2 + j]
            nb, _, hh, ww = act.shape
            patches = _im2col3x3(act)                               # (N, C_in*9, H*W)
            y = conv_bn_relu(patches, w_mat, scale, shift)          # (N, C_out, H*W)
            act = y.reshape(nb, w_mat.shape[0], hh, ww)

    feat = act.reshape(n, 16 * 8 * 8)                               # (N, 1024)
    m_col = m_scalar.reshape(n, 1).astype(jnp.float32)
    out = mlp_head(feat, m_col,
                   params["w1a"], params["w1m"], params["b1"],
                   params["w2"], params["b2"],
                   params["w3"], params["b3"])                      # (N, 2n)

    rho1 = out[:, :n_iters].reshape(n, 1, 1, n_iters)
    rho2 = out[:, n_iters:].reshape(n, 1, 1, n_iters)
    return rho1, rho2


if __name__ == "__main__":
    key = jax.random.PRNGKey(0)
    k_psf, k_params = jax.random.split(key)

    batch, h, w = 2, 32, 32
    n_iters = 8

    # PSF-like nonnegative kernel, normalized to sum to 1 per sample; M = photon-level scalar.
    psf = jnp.abs(jax.random.normal(k_psf, (batch, 1, h, w), dtype=jnp.float32))
    psf = psf / jnp.sum(psf, axis=(2, 3), keepdims=True)
    m = jnp.array([10.0, 20.0], dtype=jnp.float32)

    params = init_params(k_params, n_iters)
    rho1, rho2 = init_net_forward(psf, m, params, n_iters)
    rho1, rho2 = jax.block_until_ready((rho1, rho2))

    assert rho1.shape == (batch, 1, 1, n_iters)
    assert rho2.shape == (batch, 1, 1, n_iters)
    assert bool(jnp.all(jnp.isfinite(rho1))) and bool(jnp.all(jnp.isfinite(rho2)))
    assert bool(jnp.all(rho1 > 0.0)) and bool(jnp.all(rho2 > 0.0))  # Softplus + 1e-6 > 0

    print("KERNEL_OK")
</pallas_src>

<mosaic_0001>
module attributes {stable_mosaic.version = 11 : i64} {
  func.func @_fft_mag2_kernel(%arg0: i32, %arg1: memref<1x128x128xf32, #tpu.memory_space<vmem>>, %arg2: memref<128x128xf32, #tpu.memory_space<vmem>>, %arg3: memref<128x128xf32, #tpu.memory_space<vmem>>, %arg4: memref<1x128x128xf32, #tpu.memory_space<vmem>>) attributes {dimension_semantics = [#tpu.dimension_semantics<parallel>], iteration_bounds = array<i64: 2>, scalar_prefetch = 0 : i64, scratch_operands = 0 : i64, tpu.core_type = #tpu.core_type<tc>, window_params = [{transform_indices = @transform_0, window_bounds = array<i64: 1, 128, 128>}, {pipeline_mode = #tpu.pipeline_mode<synchronous>, transform_indices = @transform_1, window_bounds = array<i64: 128, 128>}, {pipeline_mode = #tpu.pipeline_mode<synchronous>, transform_indices = @transform_2, window_bounds = array<i64: 128, 128>}, {transform_indices = @transform_3, window_bounds = array<i64: 1, 128, 128>}]} {
    %c0 = arith.constant 0 : index
    %c0_0 = arith.constant 0 : index
    %c0_1 = arith.constant 0 : index
    %0 = vector.load %arg1[%c0, %c0_0, %c0_1] : memref<1x128x128xf32, #tpu.memory_space<vmem>>, vector<1x128x128xf32>
    %1 = vector.shape_cast %0 : vector<1x128x128xf32> to vector<128x128xf32>
    %c0_2 = arith.constant 0 : index
    %c0_3 = arith.constant 0 : index
    %2 = vector.load %arg2[%c0_2, %c0_3] : memref<128x128xf32, #tpu.memory_space<vmem>>, vector<128x128xf32>
    %c0_4 = arith.constant 0 : index
    %c0_5 = arith.constant 0 : index
    %3 = vector.load %arg3[%c0_4, %c0_5] : memref<128x128xf32, #tpu.memory_space<vmem>>, vector<128x128xf32>
    %cst = arith.constant dense<0.000000e+00> : vector<128x128xf32>
    %4 = tpu.matmul %2, %1, %cst {dimension_numbers = #tpu.dot_dimension_numbers<[1], [0], [0], [1], [0, 0, 1, 1], [], []>} : vector<128x128xf32>, vector<128x128xf32>, vector<128x128xf32> -> vector<128x128xf32>
    %cst_6 = arith.constant dense<0.000000e+00> : vector<128x128xf32>
    %5 = tpu.matmul %3, %1, %cst_6 {dimension_numbers = #tpu.dot_dimension_numbers<[1], [0], [0], [1], [0, 0, 1, 1], [], []>} : vector<128x128xf32>, vector<128x128xf32>, vector<128x128xf32> -> vector<128x128xf32>
    %cst_7 = arith.constant dense<0.000000e+00> : vector<128x128xf32>
    %6 = tpu.matmul %4, %2, %cst_7 {dimension_numbers = #tpu.dot_dimension_numbers<[1], [0], [0], [1], [0, 0, 1, 1], [], []>} : vector<128x128xf32>, vector<128x128xf32>, vector<128x128xf32> -> vector<128x128xf32>
    %cst_8 = arith.constant dense<0.000000e+00> : vector<128x128xf32>
    %7 = tpu.matmul %5, %3, %cst_8 {dimension_numbers = #tpu.dot_dimension_numbers<[1], [0], [0], [1], [0, 0, 1, 1], [], []>} : vector<128x128xf32>, vector<128x128xf32>, vector<128x128xf32> -> vector<128x128xf32>
    %8 = arith.subf %6, %7 : vector<128x128xf32>
    %cst_9 = arith.constant dense<0.000000e+00> : vector<128x128xf32>
    %9 = tpu.matmul %4, %3, %cst_9 {dimension_numbers = #tpu.dot_dimension_numbers<[1], [0], [0], [1], [0, 0, 1, 1], [], []>} : vector<128x128xf32>, vector<128x128xf32>, vector<128x128xf32> -> vector<128x128xf32>
    %cst_10 = arith.constant dense<0.000000e+00> : vector<128x128xf32>
    %10 = tpu.matmul %5, %2, %cst_10 {dimension_numbers = #tpu.dot_dimension_numbers<[1], [0], [0], [1], [0, 0, 1, 1], [], []>} : vector<128x128xf32>, vector<128x128xf32>, vector<128x128xf32> -> vector<128x128xf32>
    %11 = arith.addf %9, %10 : vector<128x128xf32>
    %12 = arith.mulf %8, %8 : vector<128x128xf32>
    %13 = arith.mulf %11, %11 : vector<128x128xf32>
    %14 = arith.addf %12, %13 : vector<128x128xf32>
    %c0_11 = arith.constant 0 : index
    %c0_12 = arith.constant 0 : index
    %c0_13 = arith.constant 0 : index
    %15 = vector.load %arg4[%c0_11, %c0_12, %c0_13] : memref<1x128x128xf32, #tpu.memory_space<vmem>>, vector<1x128x128xf32>
    %16 = vector.shape_cast %15 : vector<1x128x128xf32> to vector<128x128xf32>
    %17 = vector.shape_cast %14 : vector<128x128xf32> to vector<1x128x128xf32>
    tpu.vector_store %arg4[%c0_11, %c0_12, %c0_13], %17 {strides = array<i32>} : memref<1x128x128xf32, #tpu.memory_space<vmem>>, vector<1x128x128xf32>,
    return
  }
  func.func @transform_0(%arg0: i32) -> (i32, i32, i32) {
    %c0_i32 = arith.constant 0 : i32
    %c0_i32_0 = arith.constant 0 : i32
    %c0_i32_1 = arith.constant 0 : i32
    return %arg0, %c0_i32, %c0_i32_0 : i32, i32, i32
  }
  func.func @transform_1(%arg0: i32) -> (i32, i32) {
    %c0_i32 = arith.constant 0 : i32
    %c0_i32_0 = arith.constant 0 : i32
    %c0_i32_1 = arith.constant 0 : i32
    return %c0_i32, %c0_i32_0 : i32, i32
  }
  func.func @transform_2(%arg0: i32) -> (i32, i32) {
    %c0_i32 = arith.constant 0 : i32
    %c0_i32_0 = arith.constant 0 : i32
    %c0_i32_1 = arith.constant 0 : i32
    return %c0_i32, %c0_i32_0 : i32, i32
  }
  func.func @transform_3(%arg0: i32) -> (i32, i32, i32) {
    %c0_i32 = arith.constant 0 : i32
    %c0_i32_0 = arith.constant 0 : i32
    %c0_i32_1 = arith.constant 0 : i32
    return %arg0, %c0_i32, %c0_i32_0 : i32, i32, i32
  }
}

</mosaic_0001>

<llo_original>
// kernel: tpu_custom_call.1
$region0: #{tpu_custom_call.1}
  #allocation0 [shape = 'u32[]', space=smem, size = 0x4, offset = 0x4, fixed_abs, tag = 'smem constant byte address 0x4 - core index']
  #allocation1 [shape = 'u32[144,128]{1,0:T(1,128)}', space=vmem, size = 0x12000, scoped, tag = 'internal scratch']
  %s0 = inlined_call_operand.hbm [shape: f32[2,128,128], index: 0, kind: input, shape index: {}]
  %s1 = inlined_call_operand.hbm [shape: f32[128,128], index: 1, kind: input, shape index: {}]
  %s2 = inlined_call_operand.hbm [shape: f32[128,128], index: 2, kind: input, shape index: {}]
  %s3 = inlined_call_operand.hbm [shape: f32[2,128,128], index: 3, kind: output, shape index: {}]
  %s4 = sld [smem:[#allocation0]]
  $region57: #{tpu_custom_call.1} parent=0
    _
  %s6 = ssub.s32 1, %s4
  %s7 = scalar_select 0, %s6, %s4
  $region1: #{tpu_custom_call.1} parent=0
    #allocation2 [shape = 'u8[131072]{0}', space=vmem, size = 0x20000, scoped, tag = 'input window, operand 0']
    #allocation3 [shape = 's32[2]{0}', space=sflag, size = 0x8, scoped, tag = 'scoped memory for tpu_custom_call.1']
    #allocation4 [shape = 's32[2]{0}', space=sflag, size = 0x8, scoped, tag = 'scoped memory for tpu_custom_call.1']
    #allocation5 [shape = 'u8[65536]{0}', space=vmem, size = 0x10000, scoped, tag = 'input window, operand 1, single buffered']
    #allocation6 [shape = 's32[1]{0}', space=sflag, size = 0x4, scoped, tag = 'scoped memory for tpu_custom_call.1']
    #allocation7 [shape = 'u8[65536]{0}', space=vmem, size = 0x10000, scoped, tag = 'input window, operand 2, single buffered']
    #allocation8 [shape = 'u8[131072]{0}', space=vmem, size = 0x20000, scoped, tag = 'output window, operand 0']
    %8 = vsyncpa [#allocation3], 0
    %s9 = scalar_lea.sflag [#allocation3], 1
    %10 = vsyncpa %s9, 0
    %11 = vsyncpa [#allocation6], 0
    %12 = vsyncpa [#allocation4], 0
    %s13 = scalar_lea.sflag [#allocation4], 1
    %14 = vsyncpa %s13, 0
    loop: start=0, step=1, limit=4
    $region2: #{tpu_custom_call.1} parent=1 // loop_pre_header
      _
    $region3: #{tpu_custom_call.1} parent=1 // loop_header
      %s16 = sphi 0, %s20
      %p17 = scmp.ge.s32.totalorder %s16, 4
      %s26 = sphi 0, %s28
      %s29 = sphi 0, %s26
      %s30 = sphi 0, %s29
      %s46 = sphi 0, %s30
      %s50 = sphi 0, %s50
      %s52 = sphi 0, %s50
      %s53 = sphi 0, %s52
      %s67 = sphi 0, %s53
      %s71 = sphi 0, %s71
      %s73 = sphi 0, %s71
      %s74 = sphi 0, %s73
      %s88 = sphi 0, %s74
      %s94 = sphi 0, %s96
      %s97 = sphi 0, %s94
      %s98 = sphi 0, %s97
      %s114 = sphi 0, %s98
    $region4: #{tpu_custom_call.1} parent=1 // loop_header_branch
      %19 = sbr.rel (%p17) target = $region8
    $region5: #{tpu_custom_call.1} parent=1 // loop_body
      %s21 = ssub.s32 %s16, 1
      %s22 = ssub.s32 %s16, 2
      %s23 = sadd.s32 %s16, 1
      %s24 = ssub.s32 %s16, %s23
      %p25 = scmp.eq.s32.totalorder %s24, 0
      %s27 = sadd.s32 %s26, 1
      %s28 = scalar_select %p25, %s26, %s27
      %p31 = pneg %p25
      %p32 = scmp.eq.s32.totalorder %s16, 1
      %p33 = por %p31, %p32
      %p34 = scmp.ne.s32.totalorder %s26, %s29
      %p35 = scmp.eq.s32.totalorder %s16, 0
      %p36 = por %p34, %p35
      %p37 = scmp.ne.s32.totalorder %s26, %s29
      %p38 = scmp.eq.s32.totalorder %s21, 1
      %p39 = por %p37, %p38
      %p40 = scmp.ne.s32.totalorder %s29, %s30
      %p41 = scmp.eq.s32.totalorder %s21, 0
      %p42 = por %p40, %p41
      %p43 = scmp.ne.s32.totalorder %s29, %s30
      %p44 = scmp.eq.s32.totalorder %s22, 1
      %p45 = por %p43, %p44
      %p47 = scmp.ne.s32.totalorder %s30, %s46
      %p48 = scmp.eq.s32.totalorder %s22, 0
      %p49 = por %p47, %p48
      %s51 = sadd.s32 %s50, 1
      %p54 = scmp.eq.s32.totalorder %s16, 1
      %p55 = scmp.ne.s32.totalorder %s50, %s52
      %p56 = scmp.eq.s32.totalorder %s16, 0
      %p57 = por %p55, %p56
      %p58 = scmp.ne.s32.totalorder %s50, %s52
      %p59 = scmp.eq.s32.totalorder %s21, 1
      %p60 = por %p58, %p59
      %p61 = scmp.ne.s32.totalorder %s52, %s53
      %p62 = scmp.eq.s32.totalorder %s21, 0
      %p63 = por %p61, %p62
      %p64 = scmp.ne.s32.totalorder %s52, %s53
      %p65 = scmp.eq.s32.totalorder %s22, 1
      %p66 = por %p64, %p65
      %p68 = scmp.ne.s32.totalorder %s53, %s67
      %p69 = scmp.eq.s32.totalorder %s22, 0
      %p70 = por %p68, %p69
      %s72 = sadd.s32 %s71, 1
      %p75 = scmp.eq.s32.totalorder %s16, 1
      %p76 = scmp.ne.s32.totalorder %s71, %s73
      %p77 = scmp.eq.s32.totalorder %s16, 0
      %p78 = por %p76, %p77
      %p79 = scmp.ne.s32.totalorder %s71, %s73
      %p80 = scmp.eq.s32.totalorder %s21, 1
      %p81 = por %p79, %p80
      %p82 = scmp.ne.s32.totalorder %s73, %s74
      %p83 = scmp.eq.s32.totalorder %s21, 0
      %p84 = por %p82, %p83
      %p85 = scmp.ne.s32.totalorder %s73, %s74
      %p86 = scmp.eq.s32.totalorder %s22, 1
      %p87 = por %p85, %p86
      %p89 = scmp.ne.s32.totalorder %s74, %s88
      %p90 = scmp.eq.s32.totalorder %s22, 0
      %p91 = por %p89, %p90
      %s92 = ssub.s32 %s16, %s23
      %p93 = scmp.eq.s32.totalorder %s92, 0
      %s95 = sadd.s32 %s94, 1
      %s96 = scalar_select %p93, %s94, %s95
      %p99 = pneg %p93
      %p100 = scmp.eq.s32.totalorder %s16, 1
      %p101 = por %p99, %p100
      %p102 = scmp.ne.s32.totalorder %s94, %s97
      %p103 = scmp.eq.s32.totalorder %s16, 0
      %p104 = por %p102, %p103
      %p105 = scmp.ne.s32.totalorder %s94, %s97
      %p106 = scmp.eq.s32.totalorder %s21, 1
      %p107 = por %p105, %p106
      %p108 = scmp.ne.s32.totalorder %s97, %s98
      %p109 = scmp.eq.s32.totalorder %s21, 0
      %p110 = por %p108, %p109
      %p111 = scmp.ne.s32.totalorder %s97, %s98
      %p112 = scmp.eq.s32.totalorder %s22, 1
      %p113 = por %p111, %p112
      %p115 = scmp.ne.s32.totalorder %s98, %s114
      %p116 = scmp.eq.s32.totalorder %s22, 0
      %p117 = por %p115, %p116
      %p118 = scmp.le.s32.totalorder 1, %s16
      %p119 = scmp.lt.s32.totalorder %s16, 3
      %p120 = pnand %p118, %p119
      %p121 = pneg %p120
      // Predicated region
      $region9: #{tpu_custom_call.1} parent=5 // pred_check
        _
      $region10: #{tpu_custom_call.1} parent=5 // pred_check_branch
        %123 = sbr.rel (%p120) target = $region12
      $region11: #{tpu_custom_call.1} parent=5 // pred_region
        %s124 = ssub.s32 %s16, 1
        // Predicated region
        $region13: #{tpu_custom_call.1} parent=11 // pred_check
          %p125 = pneg %p63
        $region14: #{tpu_custom_call.1} parent=11 // pred_check_branch
          %127 = sbr.rel (%p125) target = $region16
        $region15: #{tpu_custom_call.1} parent=11 // pred_region
          %s129 = ssub.s32 2048, 2048
          %130 = vsyncadd [#allocation6], %s129
          %s131 = sshll.u32 [#allocation5], 4
          %s132 = int_to_ptr.vmem [resolvable:$true] %s131
          %137 = dma.hbm_to_vmem [thread:$0]  %s1, 2048, %s132, [#allocation6], 128, 128, 8
        $region16: #{tpu_custom_call.1} parent=11 // pred_fallthru
          _
        // Predicated region
        $region17: #{tpu_custom_call.1} parent=11 // pred_check
          %p138 = pneg %p84
        $region18: #{tpu_custom_call.1} parent=11 // pred_check_branch
          %140 = sbr.rel (%p138) target = $region20
        $region19: #{tpu_custom_call.1} parent=11 // pred_region
          %s142 = ssub.s32 2048, 2048
          %143 = vsyncadd [#allocation6], %s142
          %s144 = sshll.u32 [#allocation7], 4
          %s145 = int_to_ptr.vmem [resolvable:$true] %s144
          %150 = dma.hbm_to_vmem [thread:$0]  %s2, 2048, %s145, [#allocation6], 128, 128, 8
        $region20: #{tpu_custom_call.1} parent=11 // pred_fallthru
          _
      $region12: #{tpu_custom_call.1} parent=5 // pred_fallthru
        _
      %p151 = scmp.lt.s32.totalorder %s16, 2
      // Predicated region
      $region21: #{tpu_custom_call.1} parent=5 // pred_check
        %p152 = pneg %p151
      $region22: #{tpu_custom_call.1} parent=5 // pred_check_branch
        %154 = sbr.rel (%p152) target = $region24
      $region23: #{tpu_custom_call.1} parent=5 // pred_region
        // Predicated region
        $region25: #{tpu_custom_call.1} parent=23 // pred_check
          %p155 = pneg %p36
        $region26: #{tpu_custom_call.1} parent=23 // pred_check_branch
          %157 = sbr.rel (%p155) target = $region28
        $region27: #{tpu_custom_call.1} parent=23 // pred_region
          %s158 = sand.u32 %s26, 1
          %s159 = scalar_lea.sflag [#allocation3], %s158
          %s160 = sand.u32 %s26, 1
          %s161 = smul.addr %s160, 128
          %s162 = scalar_lea.vmem [#allocation2], %s161
          %s164 = ssub.s32 2048, 2048
          %165 = vsyncadd %s159, %s164
          %s166 = smul.addr %s16, 16
          %s167 = smul.addr %s166, 128
          %s168 = scalar_lea.hbm %s0, %s167
          %s169 = sshll.u32 %s162, 4
          %s170 = int_to_ptr.vmem [resolvable:$true] %s169
          %175 = dma.hbm_to_vmem [thread:$0]  %s168, 2048, %s170, %s159, 128, 128, 8
        $region28: #{tpu_custom_call.1} parent=23 // pred_fallthru
          _
      $region24: #{tpu_custom_call.1} parent=5 // pred_fallthru
        _
      %p176 = scmp.le.s32.totalorder 1, %s16
      %p177 = scmp.lt.s32.totalorder %s16, 3
      %p178 = pnand %p176, %p177
      %p179 = pneg %p178
      // Predicated region
      $region29: #{tpu_custom_call.1} parent=5 // pred_check
        _
      $region30: #{tpu_custom_call.1} parent=5 // pred_check_branch
        %181 = sbr.rel (%p178) target = $region32
      $region31: #{tpu_custom_call.1} parent=5 // pred_region
        %s182 = ssub.s32 %s16, 1
        %s183 = sand.u32 %s29, 1
        %s184 = scalar_lea.sflag [#allocation3], %s183
        %s185 = sand.u32 %s29, 1
        %s186 = smul.addr %s185, 128
        %s187 = scalar_lea.vmem [#allocation2], %s186
        // Predicated region
        $region33: #{tpu_custom_call.1} parent=31 // pred_check
          %p188 = pneg %p42
        $region34: #{tpu_custom_call.1} parent=31 // pred_check_branch
          %190 = sbr.rel (%p188) target = $region36
        $region35: #{tpu_custom_call.1} parent=31 // pred_region
          %191 = dma.done %s184, 2048
        $region36: #{tpu_custom_call.1} parent=31 // pred_fallthru
          _
        // Predicated region
        $region37: #{tpu_custom_call.1} parent=31 // pred_check
          %p192 = pneg %p63
        $region38: #{tpu_custom_call.1} parent=31 // pred_check_branch
          %194 = sbr.rel (%p192) target = $region40
        $region39: #{tpu_custom_call.1} parent=31 // pred_region
          %195 = dma.done [#allocation6], 2048
        $region40: #{tpu_custom_call.1} parent=31 // pred_fallthru
          _
        // Predicated region
        $region41: #{tpu_custom_call.1} parent=31 // pred_check
          %p196 = pneg %p84
        $region42: #{tpu_custom_call.1} parent=31 // pred_check_branch
          %198 = sbr.rel (%p196) target = $region44
        $region43: #{tpu_custom_call.1} parent=31 // pred_region
          %199 = dma.done [#allocation6], 2048
        $region44: #{tpu_custom_call.1} parent=31 // pred_fallthru
          _
        %s200 = sand.u32 %s29, 1
        %s201 = scalar_lea.sflag [#allocation3], %s200
        %s202 = sand.u32 %s29, 1
        %s203 = smul.addr %s202, 128
        %s204 = scalar_lea.vmem [#allocation2], %s203
        %p205 = pneg %p42
        %p206 = pneg %p39
        %p207 = pneg %p63
        %p208 = pneg %p60
        %p209 = pneg %p84
        %p210 = pneg %p81
        %p211 = pneg %p110
        %p212 = pneg %p107
        %s213 = sand.u32 %s97, 1
        %s214 = scalar_lea.sflag [#allocation4], %s213
        %s215 = sand.u32 %s97, 1
        %s216 = smul.addr %s215, 128
        %s217 = scalar_lea.vmem [#allocation8], %s216
        %v218 = vld [vmem:[%s187] sm:$0xff]
        %v219 = vld [vmem:[%s187 + $0x8] sm:$0xff]
        %v220 = vld [vmem:[%s187 + $0x10] sm:$0xff]
        %v221 = vld [vmem:[%s187 + $0x18] sm:$0xff]
        %v222 = vld [vmem:[%s187 + $0x20] sm:$0xff]
        %v223 = vld [vmem:[%s187 + $0x28] sm:$0xff]
        %v224 = vld [vmem:[%s187 + $0x30] sm:$0xff]
        %v225 = vld [vmem:[%s187 + $0x38] sm:$0xff]
        %v226 = vld [vmem:[%s187 + $0x40] sm:$0xff]
        %v227 = vld [vmem:[%s187 + $0x48] sm:$0xff]
        %v228 = vld [vmem:[%s187 + $0x50] sm:$0xff]
        %v229 = vld [vmem:[%s187 + $0x58] sm:$0xff]
        %v230 = vld [vmem:[%s187 + $0x60] sm:$0xff]
        %v231 = vld [vmem:[%s187 + $0x68] sm:$0xff]
        %v232 = vld [vmem:[%s187 + $0x70] sm:$0xff]
        %v233 = vld [vmem:[%s187 + $0x78] sm:$0xff]
        %v234 = vld [vmem:[#allocation5] sm:$0xff]
        %v235 = vld [vmem:[#allocation5 + $0x8] sm:$0xff]
        %v236 = vld [vmem:[#allocation5 + $0x10] sm:$0xff]
        %v237 = vld [vmem:[#allocation5 + $0x18] sm:$0xff]
        %v238 = vld [vmem:[#allocation5 + $0x20] sm:$0xff]
        %v239 = vld [vmem:[#allocation5 + $0x28] sm:$0xff]
        %v240 = vld [vmem:[#allocation5 + $0x30] sm:$0xff]
        %v241 = vld [vmem:[#allocation5 + $0x38] sm:$0xff]
        %v242 = vld [vmem:[#allocation5 + $0x40] sm:$0xff]
        %v243 = vld [vmem:[#allocation5 + $0x48] sm:$0xff]
        %v244 = vld [vmem:[#allocation5 + $0x50] sm:$0xff]
        %v245 = vld [vmem:[#allocation5 + $0x58] sm:$0xff]
        %v246 = vld [vmem:[#allocation5 + $0x60] sm:$0xff]
        %v247 = vld [vmem:[#allocation5 + $0x68] sm:$0xff]
        %v248 = vld [vmem:[#allocation5 + $0x70] sm:$0xff]
        %v249 = vld [vmem:[#allocation5 + $0x78] sm:$0xff]
        %v250 = vld [vmem:[#allocation7] sm:$0xff]
        %v251 = vld [vmem:[#allocation7 + $0x8] sm:$0xff]
        %v252 = vld [vmem:[#allocation7 + $0x10] sm:$0xff]
        %v253 = vld [vmem:[#allocation7 + $0x18] sm:$0xff]
        %v254 = vld [vmem:[#allocation7 + $0x20] sm:$0xff]
        %v255 = vld [vmem:[#allocation7 + $0x28] sm:$0xff]
        %v256 = vld [vmem:[#allocation7 + $0x30] sm:$0xff]
        %v257 = vld [vmem:[#allocation7 + $0x38] sm:$0xff]
        %v258 = vld [vmem:[#allocation7 + $0x40] sm:$0xff]
        %v259 = vld [vmem:[#allocation7 + $0x48] sm:$0xff]
        %v260 = vld [vmem:[#allocation7 + $0x50] sm:$0xff]
        %v261 = vld [vmem:[#allocation7 + $0x58] sm:$0xff]
        %v262 = vld [vmem:[#allocation7 + $0x60] sm:$0xff]
        %v263 = vld [vmem:[#allocation7 + $0x68] sm:$0xff]
        %v264 = vld [vmem:[#allocation7 + $0x70] sm:$0xff]
        %v265 = vld [vmem:[#allocation7 + $0x78] sm:$0xff]
        %266 = vmatprep.subr.mxu0 0.0
        %267 = vmatpush1.msra.mxu0 %v218
        %268 = vmatprep.subr.mxu0 0.0
        %269 = vmatpush1.msra.mxu0 %v219
        %270 = vmatprep.subr.mxu0 0.0
        %271 = vmatpush1.msra.mxu0 %v220
        %272 = vmatprep.subr.mxu0 0.0
        %273 = vmatpush1.msra.mxu0 %v221
        %274 = vmatprep.subr.mxu0 0.0
        %275 = vmatpush1.msra.mxu0 %v222
        %276 = vmatprep.subr.mxu0 0.0
        %277 = vmatpush1.msra.mxu0 %v223
        %278 = vmatprep.subr.mxu0 0.0
        %279 = vmatpush1.msra.mxu0 %v224
        %280 = vmatprep.subr.mxu0 0.0
        %281 = vmatpush1.msra.mxu0 %v225
        %282 = vmatprep.subr.mxu0 0.0
        %283 = vmatpush1.msra.mxu0 %v226
        %284 = vmatprep.subr.mxu0 0.0
        %285 = vmatpush1.msra.mxu0 %v227
        %286 = vmatprep.subr.mxu0 0.0
        %287 = vmatpush1.msra.mxu0 %v228
        %288 = vmatprep.subr.mxu0 0.0
        %289 = vmatpush1.msra.mxu0 %v229
        %290 = vmatprep.subr.mxu0 0.0
        %291 = vmatpush1.msra.mxu0 %v230
        %292 = vmatprep.subr.mxu0 0.0
        %293 = vmatpush1.msra.mxu0 %v231
        %294 = vmatprep.subr.mxu0 0.0
        %295 = vmatpush1.msra.mxu0 %v232
        %296 = vmatprep.subr.mxu0 0.0
        %297 = vmatpush1.msra.mxu0 %v233
        %298 = vmatprep.subr.mxu0 0.0
        %299 = vmatpush1.msra.mxu0 0.0
        %300 = vmatprep.subr.mxu0 0.0
        %301 = vmatpush1.msra.mxu0 0.0
        %302 = vmatprep.subr.mxu0 0.0
        %303 = vmatpush1.msra.mxu0 0.0
        %304 = vmatprep.subr.mxu0 0.0
        %305 = vmatpush1.msra.mxu0 0.0
        %306 = vmatprep.subr.mxu0 0.0
        %307 = vmatpush1.msra.mxu0 0.0
        %308 = vmatprep.subr.mxu0 0.0
        %309 = vmatpush1.msra.mxu0 0.0
        %310 = vmatprep.subr.mxu0 0.0
        %311 = vmatpush1.msra.mxu0 0.0
        %312 = vmatprep.subr.mxu0 0.0
        %313 = vmatpush1.msra.mxu0 0.0
        %314 = vmatprep.subr.mxu0 0.0
        %315 = vmatpush1.msra.mxu0 0.0
        %316 = vmatprep.subr.mxu0 0.0
        %317 = vmatpush1.msra.mxu0 0.0
        %318 = vmatprep.subr.mxu0 0.0
        %319 = vmatpush1.msra.mxu0 0.0
        %320 = vmatprep.subr.mxu0 0.0
        %321 = vmatpush1.msra.mxu0 0.0
        %322 = vmatprep.subr.mxu0 0.0
        %323 = vmatpush1.msra.mxu0 0.0
        %324 = vmatprep.subr.mxu0 0.0
        %325 = vmatpush1.msra.mxu0 0.0
        %326 = vmatprep.subr.mxu0 0.0
        %327 = vmatpush1.msra.mxu0 0.0
        %328 = vmatprep.subr.mxu0 0.0
        %329 = vmatpush1.msra.mxu0 0.0
        %330 = vmatprep.mubr.f32.mxu0 0.0
        %331 = vmatmul.mubr.f32.gmra.mrb[0].mxu0 %v234
        %v332 = vpop.f32.mrb[0].mxu0
        %v333 = vadd.f32 0.0, %v332
        %v334 = vpop.f32.mrb[0].mxu0
        %335 = vmatprep.mubr.f32.mxu0 0.0
        %336 = vmatmul.mubr.f32.gmra.mrb[0].mxu0 %v235
        %v337 = vpop.f32.mrb[0].mxu0
        %v338 = vadd.f32 0.0, %v337
        %v339 = vpop.f32.mrb[0].mxu0
        %340 = vmatprep.mubr.f32.mxu0 0.0
        %341 = vmatmul.mubr.f32.gmra.mrb[0].mxu0 %v236
        %v342 = vpop.f32.mrb[0].mxu0
        %v343 = vadd.f32 0.0, %v342
        %v344 = vpop.f32.mrb[0].mxu0
        %345 = vmatprep.mubr.f32.mxu0 0.0
        %346 = vmatmul.mubr.f32.gmra.mrb[0].mxu0 %v237
        %v347 = vpop.f32.mrb[0].mxu0
        %v348 = vadd.f32 0.0, %v347
        %v349 = vpop.f32.mrb[0].mxu0
        %350 = vmatprep.mubr.f32.mxu0 0.0
        %351 = vmatmul.mubr.f32.gmra.mrb[0].mxu0 %v238
        %v352 = vpop.f32.mrb[0].mxu0
        %v353 = vadd.f32 0.0, %v352
        %v354 = vpop.f32.mrb[0].mxu0
        %355 = vmatprep.mubr.f32.mxu0 0.0
        %356 = vmatmul.mubr.f32.gmra.mrb[0].mxu0 %v239
        %v357 = vpop.f32.mrb[0].mxu0
        %v358 = vadd.f32 0.0, %v357
        %v359 = vpop.f32.mrb[0].mxu0
        %360 = vmatprep.mubr.f32.mxu0 0.0
        %361 = vmatmul.mubr.f32.gmra.mrb[0].mxu0 %v240
        %v362 = vpop.f32.mrb[0].mxu0
        %v363 = vadd.f32 0.0, %v362
        %v364 = vpop.f32.mrb[0].mxu0
        %365 = vmatprep.mubr.f32.mxu0 0.0
        %366 = vmatmul.mubr.f32.gmra.mrb[0].mxu0 %v241
        %v367 = vpop.f32.mrb[0].mxu0
        %v368 = vadd.f32 0.0, %v367
        %v369 = vpop.f32.mrb[0].mxu0
        %370 = vmatprep.mubr.f32.mxu0 0.0
        %371 = vmatmul.mubr.f32.gmra.mrb[0].mxu0 %v242
        %v372 = vpop.f32.mrb[0].mxu0
        %v373 = vadd.f32 0.0, %v372
        %v374 = vpop.f32.mrb[0].mxu0
        %375 = vmatprep.mubr.f32.mxu0 0.0
        %376 = vmatmul.mubr.f32.gmra.mrb[0].mxu0 %v243
        %v377 = vpop.f32.mrb[0].mxu0
        %v378 = vadd.f32 0.0, %v377
        %v379 = vpop.f32.mrb[0].mxu0
        %380 = vmatprep.mubr.f32.mxu0 0.0
        %381 = vmatmul.mubr.f32.gmra.mrb[0].mxu0 %v244
        %v382 = vpop.f32.mrb[0].mxu0
        %v383 = vadd.f32 0.0, %v382
        %v384 = vpop.f32.mrb[0].mxu0
        %385 = vmatprep.mubr.f32.mxu0 0.0
        %386 = vmatmul.mubr.f32.gmra.mrb[0].mxu0 %v245
        %v387 = vpop.f32.mrb[0].mxu0
        %v388 = vadd.f32 0.0, %v387
        %v389 = vpop.f32.mrb[0].mxu0
        %390 = vmatprep.mubr.f32.mxu0 0.0
        %391 = vmatmul.mubr.f32.gmra.mrb[0].mxu0 %v246
        %v392 = vpop.f32.mrb[0].mxu0
        %v393 = vadd.f32 0.0, %v392
        %v394 = vpop.f32.mrb[0].mxu0
        %395 = vmatprep.mubr.f32.mxu0 0.0
        %396 = vmatmul.mubr.f32.gmra.mrb[0].mxu0 %v247
        %v397 = vpop.f32.mrb[0].mxu0
        %v398 = vadd.f32 0.0, %v397
        %v399 = vpop.f32.mrb[0].mxu0
        %400 = vmatprep.mubr.f32.mxu0 0.0
        %401 = vmatmul.mubr.f32.gmra.mrb[0].mxu0 %v248
        %v402 = vpop.f32.mrb[0].mxu0
        %v403 = vadd.f32 0.0, %v402
        %v404 = vpop.f32.mrb[0].mxu0
        %405 = vmatprep.mubr.f32.mxu0 0.0
        %406 = vmatmul.mubr.f32.gmra.mrb[0].mxu0 %v249
        %v407 = vpop.f32.mrb[0].mxu0
        %v408 = vadd.f32 0.0, %v407
        %v409 = vpop.f32.mrb[0].mxu0
        %410 = vdwg.mxu0
        %411 = vmatprep.subr.mxu0 0.0
        %412 = vmatpush1.msra.mxu0 %v218
        %413 = vmatprep.subr.mxu0 0.0
        %414 = vmatpush1.msra.mxu0 %v219
        %415 = vmatprep.subr.mxu0 0.0
        %416 = vmatpush1.msra.mxu0 %v220
        %417 = vmatprep.subr.mxu0 0.0
        %418 = vmatpush1.msra.mxu0 %v221
        %419 = vmatprep.subr.mxu0 0.0
        %420 = vmatpush1.msra.mxu0 %v222
        %421 = vmatprep.subr.mxu0 0.0
        %422 = vmatpush1.msra.mxu0 %v223
        %423 = vmatprep.subr.mxu0 0.0
        %424 = vmatpush1.msra.mxu0 %v224
        %425 = vmatprep.subr.mxu0 0.0
        %426 = vmatpush1.msra.mxu0 %v225
        %427 = vmatprep.subr.mxu0 0.0
        %428 = vmatpush1.msra.mxu0 %v226
        %429 = vmatprep.subr.mxu0 0.0
        %430 = vmatpush1.msra.mxu0 %v227
        %431 = vmatprep.subr.mxu0 0.0
        %432 = vmatpush1.msra.mxu0 %v228
        %433 = vmatprep.subr.mxu0 0.0
        %434 = vmatpush1.msra.mxu0 %v229
        %435 = vmatprep.subr.mxu0 0.0
        %436 = vmatpush1.msra.mxu0 %v230
        %437 = vmatprep.subr.mxu0 0.0
        %438 = vmatpush1.msra.mxu0 %v231
        %439 = vmatprep.subr.mxu0 0.0
        %440 = vmatpush1.msra.mxu0 %v232
        %441 = vmatprep.subr.mxu0 0.0
        %442 = vmatpush1.msra.mxu0 %v233
        %443 = vmatprep.subr.mxu0 0.0
        %444 = vmatpush1.msra.mxu0 0.0
        %445 = vmatprep.subr.mxu0 0.0
        %446 = vmatpush1.msra.mxu0 0.0
        %447 = vmatprep.subr.mxu0 0.0
        %448 = vmatpush1.msra.mxu0 0.0
        %449 = vmatprep.subr.mxu0 0.0
        %450 = vmatpush1.msra.mxu0 0.0
        %451 = vmatprep.subr.mxu0 0.0
        %452 = vmatpush1.msra.mxu0 0.0
        %453 = vmatprep.subr.mxu0 0.0
        %454 = vmatpush1.msra.mxu0 0.0
        %455 = vmatprep.subr.mxu0 0.0
        %456 = vmatpush1.msra.mxu0 0.0
        %457 = vmatprep.subr.mxu0 0.0
        %458 = vmatpush1.msra.mxu0 0.0
        %459 = vmatprep.subr.mxu0 0.0
        %460 = vmatpush1.msra.mxu0 0.0
        %461 = vmatprep.subr.mxu0 0.0
        %462 = vmatpush1.msra.mxu0 0.0
        %463 = vmatprep.subr.mxu0 0.0
        %464 = vmatpush1.msra.mxu0 0.0
        %465 = vmatprep.subr.mxu0 0.0
        %466 = vmatpush1.msra.mxu0 0.0
        %467 = vmatprep.subr.mxu0 0.0
        %468 = vmatpush1.msra.mxu0 0.0
        %469 = vmatprep.subr.mxu0 0.0
        %470 = vmatpush1.msra.mxu0 0.0
        %471 = vmatprep.subr.mxu0 0.0
        %472 = vmatpush1.msra.mxu0 0.0
        %473 = vmatprep.subr.mxu0 0.0
        %474 = vmatpush1.msra.mxu0 0.0
        %475 = vmatprep.mubr.f32.mxu0 0.0
        %476 = vmatmul.mubr.f32.gmra.mrb[0].mxu0 %v250
        %v477 = vpop.f32.mrb[0].mxu0
        %v478 = vadd.f32 0.0, %v477
        %v479 = vpop.f32.mrb[0].mxu0
        %480 = vmatprep.mubr.f32.mxu0 0.0
        %481 = vmatmul.mubr.f32.gmra.mrb[0].mxu0 %v251
        %v482 = vpop.f32.mrb[0].mxu0
        %v483 = vadd.f32 0.0, %v482
        %v484 = vpop.f32.mrb[0].mxu0
        %485 = vmatprep.mubr.f32.mxu0 0.0
        %486 = vmatmul.mubr.f32.gmra.mrb[0].mxu0 %v252
        %v487 = vpop.f32.mrb[0].mxu0
        %v488 = vadd.f32 0.0, %v487
        %v489 = vpop.f32.mrb[0].mxu0
        %490 = vmatprep.mubr.f32.mxu0 0.0
        %491 = vmatmul.mubr.f32.gmra.mrb[0].mxu0 %v253
        %v492 = vpop.f32.mrb[0].mxu0
        %v493 = vadd.f32 0.0, %v492
        %v494 = vpop.f32.mrb[0].mxu0
        %495 = vmatprep.mubr.f32.mxu0 0.0
        %496 = vmatmul.mubr.f32.gmra.mrb[0].mxu0 %v254
        %v497 = vpop.f32.mrb[0].mxu0
        %v498 = vadd.f32 0.0, %v497
        %v499 = vpop.f32.mrb[0].mxu0
        %500 = vmatprep.mubr.f32.mxu0 0.0
        %501 = vmatmul.mubr.f32.gmra.mrb[0].mxu0 %v255
        %v502 = vpop.f32.mrb[0].mxu0
        %v503 = vadd.f32 0.0, %v502
        %v504 = vpop.f32.mrb[0].mxu0
        %505 = vmatprep.mubr.f32.mxu0 0.0
        %506 = vmatmul.mubr.f32.gmra.mrb[0].mxu0 %v256
        %v507 = vpop.f32.mrb[0].mxu0
        %v508 = vadd.f32 0.0, %v507
        %v509 = vpop.f32.mrb[0].mxu0
        %510 = vmatprep.mubr.f32.mxu0 0.0
        %511 = vmatmul.mubr.f32.gmra.mrb[0].mxu0 %v257
        %v512 = vpop.f32.mrb[0].mxu0
        %v513 = vadd.f32 0.0, %v512
        %v514 = vpop.f32.mrb[0].mxu0
        %515 = vmatprep.mubr.f32.mxu0 0.0
        %516 = vmatmul.mubr.f32.gmra.mrb[0].mxu0 %v258
        %v517 = vpop.f32.mrb[0].mxu0
        %v518 = vadd.f32 0.0, %v517
        %v519 = vpop.f32.mrb[0].mxu0
        %520 = vmatprep.mubr.f32.mxu0 0.0
        %521 = vmatmul.mubr.f32.gmra.mrb[0].mxu0 %v259
        %v522 = vpop.f32.mrb[0].mxu0
        %v523 = vadd.f32 0.0, %v522
        %v524 = vpop.f32.mrb[0].mxu0
        %525 = vmatprep.mubr.f32.mxu0 0.0
        %526 = vmatmul.mubr.f32.gmra.mrb[0].mxu0 %v260
        %v527 = vpop.f32.mrb[0].mxu0
        %v528 = vadd.f32 0.0, %v527
        %v529 = vpop.f32.mrb[0].mxu0
        %530 = vmatprep.mubr.f32.mxu0 0.0
        %531 = vmatmul.mubr.f32.gmra.mrb[0].mxu0 %v261
        %v532 = vpop.f32.mrb[0].mxu0
        %v533 = vadd.f32 0.0, %v532
        %v534 = vpop.f32.mrb[0].mxu0
        %535 = vmatprep.mubr.f32.mxu0 0.0
        %536 = vmatmul.mubr.f32.gmra.mrb[0].mxu0 %v262
        %v537 = vpop.f32.mrb[0].mxu0
        %v538 = vadd.f32 0.0, %v537
        %v539 = vpop.f32.mrb[0].mxu0
        %540 = vmatprep.mubr.f32.mxu0 0.0
        %541 = vmatmul.mubr.f32.gmra.mrb[0].mxu0 %v263
        %v542 = vpop.f32.mrb[0].mxu0
        %v543 = vadd.f32 0.0, %v542
        %v544 = vpop.f32.mrb[0].mxu0
        %545 = vmatprep.mubr.f32.mxu0 0.0
        %546 = vmatmul.mubr.f32.gmra.mrb[0].mxu0 %v264
        %v547 = vpop.f32.mrb[0].mxu0
        %v548 = vadd.f32 0.0, %v547
        %v549 = vpop.f32.mrb[0].mxu0
        %550 = vmatprep.mubr.f32.mxu0 0.0
        %551 = vmatmul.mubr.f32.gmra.mrb[0].mxu0 %v265
        %v552 = vpop.f32.mrb[0].mxu0
        %v553 = vadd.f32 0.0, %v552
        %v554 = vpop.f32.mrb[0].mxu0
        %555 = vdwg.mxu0
        %556 = vmatprep.subr.mxu0 0.0
        %557 = vmatpush1.msra.mxu0 %v234
        %558 = vmatprep.subr.mxu0 0.0
        %559 = vmatpush1.msra.mxu0 %v235
        %560 = vmatprep.subr.mxu0 0.0
        %561 = vmatpush1.msra.mxu0 %v236
        %562 = vmatprep.subr.mxu0 0.0
        %563 = vmatpush1.msra.mxu0 %v237
        %564 = vmatprep.subr.mxu0 0.0
        %565 = vmatpush1.msra.mxu0 %v238
        %566 = vmatprep.subr.mxu0 0.0
        %567 = vmatpush1.msra.mxu0 %v239
        %568 = vmatprep.subr.mxu0 0.0
        %569 = vmatpush1.msra.mxu0 %v240
        %570 = vmatprep.subr.mxu0 0.0
        %571 = vmatpush1.msra.mxu0 %v241
        %572 = vmatprep.subr.mxu0 0.0
        %573 = vmatpush1.msra.mxu0 %v242
        %574 = vmatprep.subr.mxu0 0.0
        %575 = vmatpush1.msra.mxu0 %v243
        %576 = vmatprep.subr.mxu0 0.0
        %577 = vmatpush1.msra.mxu0 %v244
        %578 = vmatprep.subr.mxu0 0.0
        %579 = vmatpush1.msra.mxu0 %v245
        %580 = vmatprep.subr.mxu0 0.0
        %581 = vmatpush1.msra.mxu0 %v246
        %582 = vmatprep.subr.mxu0 0.0
        %583 = vmatpush1.msra.mxu0 %v247
        %584 = vmatprep.subr.mxu0 0.0
        %585 = vmatpush1.msra.mxu0 %v248
        %586 = vmatprep.subr.mxu0 0.0
        %587 = vmatpush1.msra.mxu0 %v249
        %588 = vmatprep.subr.mxu0 0.0
        %589 = vmatpush1.msra.mxu0 0.0
        %590 = vmatprep.subr.mxu0 0.0
        %591 = vmatpush1.msra.mxu0 0.0
        %592 = vmatprep.subr.mxu0 0.0
        %593 = vmatpush1.msra.mxu0 0.0
        %594 = vmatprep.subr.mxu0 0.0
        %595 = vmatpush1.msra.mxu0 0.0
        %596 = vmatprep.subr.mxu0 0.0
        %597 = vmatpush1.msra.mxu0 0.0
        %598 = vmatprep.subr.mxu0 0.0
        %599 = vmatpush1.msra.mxu0 0.0
        %600 = vmatprep.subr.mxu0 0.0
        %601 = vmatpush1.msra.mxu0 0.0
        %602 = vmatprep.subr.mxu0 0.0
        %603 = vmatpush1.msra.mxu0 0.0
        %604 = vmatprep.subr.mxu0 0.0
        %605 = vmatpush1.msra.mxu0 0.0
        %606 = vmatprep.subr.mxu0 0.0
        %607 = vmatpush1.msra.mxu0 0.0
        %608 = vmatprep.subr.mxu0 0.0
        %609 = vmatpush1.msra.mxu0 0.0
        %610 = vmatprep.subr.mxu0 0.0
        %611 = vmatpush1.msra.mxu0 0.0
        %612 = vmatprep.subr.mxu0 0.0
        %613 = vmatpush1.msra.mxu0 0.0
        %614 = vmatprep.subr.mxu0 0.0
        %615 = vmatpush1.msra.mxu0 0.0
        %616 = vmatprep.subr.mxu0 0.0
        %617 = vmatpush1.msra.mxu0 0.0
        %618 = vmatprep.subr.mxu0 0.0
        %619 = vmatpush1.msra.mxu0 0.0
        %620 = vmatprep.mubr.f32.mxu0 0.0
        %621 = vmatmul.mubr.f32.gmra.mrb[0].mxu0 %v333
        %v622 = vpop.f32.mrb[0].mxu0
        %v623 = vadd.f32 0.0, %v622
        %v624 = vpop.f32.mrb[0].mxu0
        %625 = vmatprep.mubr.f32.mxu0 0.0
        %626 = vmatmul.mubr.f32.gmra.mrb[0].mxu0 %v338
        %v627 = vpop.f32.mrb[0].mxu0
        %v628 = vadd.f32 0.0, %v627
        %v629 = vpop.f32.mrb[0].mxu0
        %630 = vmatprep.mubr.f32.mxu0 0.0
        %631 = vmatmul.mubr.f32.gmra.mrb[0].mxu0 %v343
        %v632 = vpop.f32.mrb[0].mxu0
        %v633 = vadd.f32 0.0, %v632
        %v634 = vpop.f32.mrb[0].mxu0
        %635 = vmatprep.mubr.f32.mxu0 0.0
        %636 = vmatmul.mubr.f32.gmra.mrb[0].mxu0 %v348
        %v637 = vpop.f32.mrb[0].mxu0
        %v638 = vadd.f32 0.0, %v637
        %v639 = vpop.f32.mrb[0].mxu0
        %640 = vmatprep.mubr.f32.mxu0 0.0
        %641 = vmatmul.mubr.f32.gmra.mrb[0].mxu0 %v353
        %v642 = vpop.f32.mrb[0].mxu0
        %v643 = vadd.f32 0.0, %v642
        %v644 = vpop.f32.mrb[0].mxu0
        %645 = vmatprep.mubr.f32.mxu0 0.0
        %646 = vmatmul.mubr.f32.gmra.mrb[0].mxu0 %v358
        %v647 = vpop.f32.mrb[0].mxu0
        %v648 = vadd.f32 0.0, %v647
        %v649 = vpop.f32.mrb[0].mxu0
        %650 = vmatprep.mubr.f32.mxu0 0.0
        %651 = vmatmul.mubr.f32.gmra.mrb[0].mxu0 %v363
        %v652 = vpop.f32.mrb[0].mxu0
        %v653 = vadd.f32 0.0, %v652
        %v654 = vpop.f32.mrb[0].mxu0
        %655 = vmatprep.mubr.f32.mxu0 0.0
        %656 = vmatmul.mubr.f32.gmra.mrb[0].mxu0 %v368
        %v657 = vpop.f32.mrb[0].mxu0
        %v658 = vadd.f32 0.0, %v657
        %v659 = vpop.f32.mrb[0].mxu0
        %660 = vmatprep.mubr.f32.mxu0 0.0
        %661 = vmatmul.mubr.f32.gmra.mrb[0].mxu0 %v373
        %v662 = vpop.f32.mrb[0].mxu0
        %v663 = vadd.f32 0.0, %v662
        %v664 = vpop.f32.mrb[0].mxu0
        %665 = vmatprep.mubr.f32.mxu0 0.0
        %666 = vmatmul.mubr.f32.gmra.mrb[0].mxu0 %v378
        %v667 = vpop.f32.mrb[0].mxu0
        %v668 = vadd.f32 0.0, %v667
        %v669 = vpop.f32.mrb[0].mxu0
        %670 = vmatprep.mubr.f32.mxu0 0.0
        %671 = vmatmul.mubr.f32.gmra.mrb[0].mxu0 %v383
        %v672 = vpop.f32.mrb[0].mxu0
        %v673 = vadd.f32 0.0, %v672
        %v674 = vpop.f32.mrb[0].mxu0
        %675 = vmatprep.mubr.f32.mxu0 0.0
        %676 = vmatmul.mubr.f32.gmra.mrb[0].mxu0 %v388
        %v677 = vpop.f32.mrb[0].mxu0
        %v678 = vadd.f32 0.0, %v677
        %v679 = vpop.f32.mrb[0].mxu0
        %680 = vmatprep.mubr.f32.mxu0 0.0
        %681 = vmatmul.mubr.f32.gmra.mrb[0].mxu0 %v393
        %v682 = vpop.f32.mrb[0].mxu0
        %v683 = vadd.f32 0.0, %v682
        %v684 = vpop.f32.mrb[0].mxu0
        %685 = vmatprep.mubr.f32.mxu0 0.0
        %686 = vmatmul.mubr.f32.gmra.mrb[0].mxu0 %v398
        %v687 = vpop.f32.mrb[0].mxu0
        %v688 = vadd.f32 0.0, %v687
        %v689 = vpop.f32.mrb[0].mxu0
        %690 = vmatprep.mubr.f32.mxu0 0.0
        %691 = vmatmul.mubr.f32.gmra.mrb[0].mxu0 %v403
        %v692 = vpop.f32.mrb[0].mxu0
        %v693 = vadd.f32 0.0, %v692
        %v694 = vpop.f32.mrb[0].mxu0
        %695 = vmatprep.mubr.f32.mxu0 0.0
        %696 = vmatmul.mubr.f32.gmra.mrb[0].mxu0 %v408
        %v697 = vpop.f32.mrb[0].mxu0
        %v698 = vadd.f32 0.0, %v697
        %v699 = vpop.f32.mrb[0].mxu0
        %700 = vdwg.mxu0
        %701 = vmatprep.subr.mxu0 0.0
        %702 = vmatpush1.msra.mxu0 %v250
        %703 = vmatprep.subr.mxu0 0.0
        %704 = vmatpush1.msra.mxu0 %v251
        %705 = vmatprep.subr.mxu0 0.0
        %706 = vmatpush1.msra.mxu0 %v252
        %707 = vmatprep.subr.mxu0 0.0
        %708 = vmatpush1.msra.mxu0 %v253
        %709 = vmatprep.subr.mxu0 0.0
        %710 = vmatpush1.msra.mxu0 %v254
        %711 = vmatprep.subr.mxu0 0.0
        %712 = vmatpush1.msra.mxu0 %v255
        %713 = vmatprep.subr.mxu0 0.0
        %714 = vmatpush1.msra.mxu0 %v256
        %715 = vmatprep.subr.mxu0 0.0
        %716 = vmatpush1.msra.mxu0 %v257
        %717 = vmatprep.subr.mxu0 0.0
        %718 = vmatpush1.msra.mxu0 %v258
        %719 = vmatprep.subr.mxu0 0.0
        %720 = vmatpush1.msra.mxu0 %v259
        %721 = vmatprep.subr.mxu0 0.0
        %722 = vmatpush1.msra.mxu0 %v260
        %723 = vmatprep.subr.mxu0 0.0
        %724 = vmatpush1.msra.mxu0 %v261
        %725 = vmatprep.subr.mxu0 0.0
        %726 = vmatpush1.msra.mxu0 %v262
        %727 = vmatprep.subr.mxu0 0.0
        %728 = vmatpush1.msra.mxu0 %v263
        %729 = vmatprep.subr.mxu0 0.0
        %730 = vmatpush1.msra.mxu0 %v264
        %731 = vmatprep.subr.mxu0 0.0
        %732 = vmatpush1.msra.mxu0 %v265
        %733 = vmatprep.subr.mxu0 0.0
        %734 = vmatpush1.msra.mxu0 0.0
        %735 = vmatprep.subr.mxu0 0.0
        %736 = vmatpush1.msra.mxu0 0.0
        %737 = vmatprep.subr.mxu0 0.0
        %738 = vmatpush1.msra.mxu0 0.0
        %739 = vmatprep.subr.mxu0 0.0
        %740 = vmatpush1.msra.mxu0 0.0
        %741 = vmatprep.subr.mxu0 0.0
        %742 = vmatpush1.msra.mxu0 0.0
        %743 = vmatprep.subr.mxu0 0.0
        %744 = vmatpush1.msra.mxu0 0.0
        %745 = vmatprep.subr.mxu0 0.0
        %746 = vmatpush1.msra.mxu0 0.0
        %747 = vmatprep.subr.mxu0 0.0
        %748 = vmatpush1.msra.mxu0 0.0
        %749 = vmatprep.subr.mxu0 0.0
        %750 = vmatpush1.msra.mxu0 0.0
        %751 = vmatprep.subr.mxu0 0.0
        %752 = vmatpush1.msra.mxu0 0.0
        %753 = vmatprep.subr.mxu0 0.0
        %754 = vmatpush1.msra.mxu0 0.0
        %755 = vmatprep.subr.mxu0 0.0
        %756 = vmatpush1.msra.mxu0 0.0
        %757 = vmatprep.subr.mxu0 0.0
        %758 = vmatpush1.msra.mxu0 0.0
        %759 = vmatprep.subr.mxu0 0.0
        %760 = vmatpush1.msra.mxu0 0.0
        %761 = vmatprep.subr.mxu0 0.0
        %762 = vmatpush1.msra.mxu0 0.0
        %763 = vmatprep.subr.mxu0 0.0
        %764 = vmatpush1.msra.mxu0 0.0
        %765 = vmatprep.mubr.f32.mxu0 0.0
        %766 = vmatmul.mubr.f32.gmra.mrb[0].mxu0 %v478
        %v767 = vpop.f32.mrb[0].mxu0
        %v768 = vadd.f32 0.0, %v767
        %v769 = vpop.f32.mrb[0].mxu0
        %770 = vmatprep.mubr.f32.mxu0 0.0
        %771 = vmatmul.mubr.f32.gmra.mrb[0].mxu0 %v483
        %v772 = vpop.f32.mrb[0].mxu0
        %v773 = vadd.f32 0.0, %v772
        %v774 = vpop.f32.mrb[0].mxu0
        %775 = vmatprep.mubr.f32.mxu0 0.0
        %776 = vmatmul.mubr.f32.gmra.mrb[0].mxu0 %v488
        %v777 = vpop.f32.mrb[0].mxu0
        %v778 = vadd.f32 0.0, %v777
        %v779 = vpop.f32.mrb[0].mxu0
        %780 = vmatprep.mubr.f32.mxu0 0.0
        %781 = vmatmul.mubr.f32.gmra.mrb[0].mxu0 %v493
        %v782 = vpop.f32.mrb[0].mxu0
        %v783 = vadd.f32 0.0, %v782
        %v784 = vpop.f32.mrb[0].mxu0
        %785 = vmatprep.mubr.f32.mxu0 0.0
        %786 = vmatmul.mubr.f32.gmra.mrb[0].mxu0 %v498
        %v787 = vpop.f32.mrb[0].mxu0
        %v788 = vadd.f32 0.0, %v787
        %v789 = vpop.f32.mrb[0].mxu0
        %790 = vmatprep.mubr.f32.mxu0 0.0
        %791 = vmatmul.mubr.f32.gmra.mrb[0].mxu0 %v503
        %v792 = vpop.f32.mrb[0].mxu0
        %v793 = vadd.f32 0.0, %v792
        %v794 = vpop.f32.mrb[0].mxu0
        %795 = vmatprep.mubr.f32.mxu0 0.0
        %796 = vmatmul.mubr.f32.gmra.mrb[0].mxu0 %v508
        %v797 = vpop.f32.mrb[0].mxu0
        %v798 = vadd.f32 0.0, %v797
        %v799 = vpop.f32.mrb[0].mxu0
        %800 = vmatprep.mubr.f32.mxu0 0.0
        %801 = vmatmul.mubr.f32.gmra.mrb[0].mxu0 %v513
        %v802 = vpop.f32.mrb[0].mxu0
        %v803 = vadd.f32 0.0, %v802
        %v804 = vpop.f32.mrb[0].mxu0
        %805 = vmatprep.mubr.f32.mxu0 0.0
        %806 = vmatmul.mubr.f32.gmra.mrb[0].mxu0 %v518
        %v807 = vpop.f32.mrb[0].mxu0
        %v808 = vadd.f32 0.0, %v807
        %v809 = vpop.f32.mrb[0].mxu0
        %810 = vmatprep.mubr.f32.mxu0 0.0
        %811 = vmatmul.mubr.f32.gmra.mrb[0].mxu0 %v523
        %v812 = vpop.f32.mrb[0].mxu0
        %v813 = vadd.f32 0.0, %v812
        %v814 = vpop.f32.mrb[0].mxu0
        %815 = vmatprep.mubr.f32.mxu0 0.0
        %816 = vmatmul.mubr.f32.gmra.mrb[0].mxu0 %v528
        %v817 = vpop.f32.mrb[0].mxu0
        %v818 = vadd.f32 0.0, %v817
        %v819 = vpop.f32.mrb[0].mxu0
        %820 = vmatprep.mubr.f32.mxu0 0.0
        %821 = vmatmul.mubr.f32.gmra.mrb[0].mxu0 %v533
        %v822 = vpop.f32.mrb[0].mxu0
        %v823 = vadd.f32 0.0, %v822
        %v824 = vpop.f32.mrb[0].mxu0
        %825 = vmatprep.mubr.f32.mxu0 0.0
        %826 = vmatmul.mubr.f32.gmra.mrb[0].mxu0 %v538
        %v827 = vpop.f32.mrb[0].mxu0
        %v828 = vadd.f32 0.0, %v827
        %v829 = vpop.f32.mrb[0].mxu0
        %830 = vmatprep.mubr.f32.mxu0 0.0
        %831 = vmatmul.mubr.f32.gmra.mrb[0].mxu0 %v543
        %v832 = vpop.f32.mrb[0].mxu0
        %v833 = vadd.f32 0.0, %v832
        %v834 = vpop.f32.mrb[0].mxu0
        %835 = vmatprep.mubr.f32.mxu0 0.0
        %836 = vmatmul.mubr.f32.gmra.mrb[0].mxu0 %v548
        %v837 = vpop.f32.mrb[0].mxu0
        %v838 = vadd.f32 0.0, %v837
        %v839 = vpop.f32.mrb[0].mxu0
        %840 = vmatprep.mubr.f32.mxu0 0.0
        %841 = vmatmul.mubr.f32.gmra.mrb[0].mxu0 %v553
        %v842 = vpop.f32.mrb[0].mxu0
        %v843 = vadd.f32 0.0, %v842
        %v844 = vpop.f32.mrb[0].mxu0
        %845 = vdwg.mxu0
        %v846 = vsub.f32 %v623, %v768
        %v847 = vsub.f32 %v628, %v773
        %v848 = vsub.f32 %v633, %v778
        %v849 = vsub.f32 %v638, %v783
        %v850 = vsub.f32 %v643, %v788
        %v851 = vsub.f32 %v648, %v793
        %v852 = vsub.f32 %v653, %v798
        %v853 = vsub.f32 %v658, %v803
        %v854 = vsub.f32 %v663, %v808
        %v855 = vsub.f32 %v668, %v813
        %v856 = vsub.f32 %v673, %v818
        %v857 = vsub.f32 %v678, %v823
        %v858 = vsub.f32 %v683, %v828
        %v859 = vsub.f32 %v688, %v833
        %v860 = vsub.f32 %v693, %v838
        %v861 = vsub.f32 %v698, %v843
        %862 = vmatprep.subr.mxu0 0.0
        %863 = vmatpush1.msra.mxu0 %v234
        %864 = vmatprep.subr.mxu0 0.0
        %865 = vmatpush1.msra.mxu0 %v235
        %866 = vmatprep.subr.mxu0 0.0
        %867 = vmatpush1.msra.mxu0 %v236
        %868 = vmatprep.subr.mxu0 0.0
        %869 = vmatpush1.msra.mxu0 %v237
        %870 = vmatprep.subr.mxu0 0.0
        %871 = vmatpush1.msra.mxu0 %v238
        %872 = vmatprep.subr.mxu0 0.0
        %873 = vmatpush1.msra.mxu0 %v239
        %874 = vmatprep.subr.mxu0 0.0
        %875 = vmatpush1.msra.mxu0 %v240
        %876 = vmatprep.subr.mxu0 0.0
        %877 = vmatpush1.msra.mxu0 %v241
        %878 = vmatprep.subr.mxu0 0.0
        %879 = vmatpush1.msra.mxu0 %v242
        %880 = vmatprep.subr.mxu0 0.0
        %881 = vmatpush1.msra.mxu0 %v243
        %882 = vmatprep.subr.mxu0 0.0
        %883 = vmatpush1.msra.mxu0 %v244
        %884 = vmatprep.subr.mxu0 0.0
        %885 = vmatpush1.msra.mxu0 %v245
        %886 = vmatprep.subr.mxu0 0.0
        %887 = vmatpush1.msra.mxu0 %v246
        %888 = vmatprep.subr.mxu0 0.0
        %889 = vmatpush1.msra.mxu0 %v247
        %890 = vmatprep.subr.mxu0 0.0
        %891 = vmatpush1.msra.mxu0 %v248
        %892 = vmatprep.subr.mxu0 0.0
        %893 = vmatpush1.msra.mxu0 %v249
        %894 = vmatprep.subr.mxu0 0.0
        %895 = vmatpush1.msra.mxu0 0.0
        %896 = vmatprep.subr.mxu0 0.0
        %897 = vmatpush1.msra.mxu0 0.0
        %898 = vmatprep.subr.mxu0 0.0
        %899 = vmatpush1.msra.mxu0 0.0
        %900 = vmatprep.subr.mxu0 0.0
        %901 = vmatpush1.msra.mxu0 0.0
        %902 = vmatprep.subr.mxu0 0.0
        %903 = vmatpush1.msra.mxu0 0.0
        %904 = vmatprep.subr.mxu0 0.0
        %905 = vmatpush1.msra.mxu0 0.0
        %906 = vmatprep.subr.mxu0 0.0
        %907 = vmatpush1.msra.mxu0 0.0
        %908 = vmatprep.subr.mxu0 0.0
        %909 = vmatpush1.msra.mxu0 0.0
        %910 = vmatprep.subr.mxu0 0.0
        %911 = vmatpush1.msra.mxu0 0.0
        %912 = vmatprep.subr.mxu0 0.0
        %913 = vmatpush1.msra.mxu0 0.0
        %914 = vmatprep.subr.mxu0 0.0
        %915 = vmatpush1.msra.mxu0 0.0
        %916 = vmatprep.subr.mxu0 0.0
        %917 = vmatpush1.msra.mxu0 0.0
        %918 = vmatprep.subr.mxu0 0.0
        %919 = vmatpush1.msra.mxu0 0.0
        %920 = vmatprep.subr.mxu0 0.0
        %921 = vmatpush1.msra.mxu0 0.0
        %922 = vmatprep.subr.mxu0 0.0
        %923 = vmatpush1.msra.mxu0 0.0
        %924 = vmatprep.subr.mxu0 0.0
        %925 = vmatpush1.msra.mxu0 0.0
        %926 = vmatprep.mubr.f32.mxu0 0.0
        %927 = vmatmul.mubr.f32.gmra.mrb[0].mxu0 %v478
        %v928 = vpop.f32.mrb[0].mxu0
        %v929 = vadd.f32 0.0, %v928
        %v930 = vpop.f32.mrb[0].mxu0
        %931 = vmatprep.mubr.f32.mxu0 0.0
        %932 = vmatmul.mubr.f32.gmra.mrb[0].mxu0 %v483
        %v933 = vpop.f32.mrb[0].mxu0
        %v934 = vadd.f32 0.0, %v933
        %v935 = vpop.f32.mrb[0].mxu0
        %936 = vmatprep.mubr.f32.mxu0 0.0
        %937 = vmatmul.mubr.f32.gmra.mrb[0].mxu0 %v488
        %v938 = vpop.f32.mrb[0].mxu0
        %v939 = vadd.f32 0.0, %v938
        %v940 = vpop.f32.mrb[0].mxu0
        %941 = vmatprep.mubr.f32.mxu0 0.0
        %942 = vmatmul.mubr.f32.gmra.mrb[0].mxu0 %v493
        %v943 = vpop.f32.mrb[0].mxu0
        %v944 = vadd.f32 0.0, %v943
        %v945 = vpop.f32.mrb[0].mxu0
        %946 = vmatprep.mubr.f32.mxu0 0.0
        %947 = vmatmul.mubr.f32.gmra.mrb[0].mxu0 %v498
        %v948 = vpop.f32.mrb[0].mxu0
        %v949 = vadd.f32 0.0, %v948
        %v950 = vpop.f32.mrb[0].mxu0
        %951 = vmatprep.mubr.f32.mxu0 0.0
        %952 = vmatmul.mubr.f32.gmra.mrb[0].mxu0 %v503
        %v953 = vpop.f32.mrb[0].mxu0
        %v954 = vadd.f32 0.0, %v953
        %v955 = vpop.f32.mrb[0].mxu0
        %956 = vmatprep.mubr.f32.mxu0 0.0
        %957 = vmatmul.mubr.f32.gmra.mrb[0].mxu0 %v508
        %v958 = vpop.f32.mrb[0].mxu0
        %v959 = vadd.f32 0.0, %v958
        %v960 = vpop.f32.mrb[0].mxu0
        %961 = vmatprep.mubr.f32.mxu0 0.0
        %962 = vmatmul.mubr.f32.gmra.mrb[0].mxu0 %v513
        %v963 = vpop.f32.mrb[0].mxu0
        %v964 = vadd.f32 0.0, %v963
        %v965 = vpop.f32.mrb[0].mxu0
        %966 = vmatprep.mubr.f32.mxu0 0.0
        %967 = vmatmul.mubr.f32.gmra.mrb[0].mxu0 %v518
        %v968 = vpop.f32.mrb[0].mxu0
        %v969 = vadd.f32 0.0, %v968
        %v970 = vpop.f32.mrb[0].mxu0
        %971 = vmatprep.mubr.f32.mxu0 0.0
        %972 = vmatmul.mubr.f32.gmra.mrb[0].mxu0 %v523
        %v973 = vpop.f32.mrb[0].mxu0
        %v974 = vadd.f32 0.0, %v973
        %v975 = vpop.f32.mrb[0].mxu0
        %976 = vmatprep.mubr.f32.mxu0 0.0
        %977 = vmatmul.mubr.f32.gmra.mrb[0].mxu0 %v528
        %v978 = vpop.f32.mrb[0].mxu0
        %v979 = vadd.f32 0.0, %v978
        %v980 = vpop.f32.mrb[0].mxu0
        %981 = vmatprep.mubr.f32.mxu0 0.0
        %982 = vmatmul.mubr.f32.gmra.mrb[0].mxu0 %v533
        %v983 = vpop.f32.mrb[0].mxu0
        %v984 = vadd.f32 0.0, %v983
        %v985 = vpop.f32.mrb[0].mxu0
        %986 = vmatprep.mubr.f32.mxu0 0.0
        %987 = vmatmul.mubr.f32.gmra.mrb[0].mxu0 %v538
        %v988 = vpop.f32.mrb[0].mxu0
        %v989 = vadd.f32 0.0, %v988
        %v990 = vpop.f32.mrb[0].mxu0
        %991 = vmatprep.mubr.f32.mxu0 0.0
        %992 = vmatmul.mubr.f32.gmra.mrb[0].mxu0 %v543
        %v993 = vpop.f32.mrb[0].mxu0
        %v994 = vadd.f32 0.0, %v993
        %v995 = vpop.f32.mrb[0].mxu0
        %996 = vmatprep.mubr.f32.mxu0 0.0
        %997 = vmatmul.mubr.f32.gmra.mrb[0].mxu0 %v548
        %v998 = vpop.f32.mrb[0].mxu0
        %v999 = vadd.f32 0.0, %v998
        %v1000 = vpop.f32.mrb[0].mxu0
        %1001 = vmatprep.mubr.f32.mxu0 0.0
        %1002 = vmatmul.mubr.f32.gmra.mrb[0].mxu0 %v553
        %v1003 = vpop.f32.mrb[0].mxu0
        %v1004 = vadd.f32 0.0, %v1003
        %v1005 = vpop.f32.mrb[0].mxu0
        %1006 = vdwg.mxu0
        %1007 = vmatprep.subr.mxu0 0.0
        %1008 = vmatpush1.msra.mxu0 %v250
        %1009 = vmatprep.subr.mxu0 0.0
        %1010 = vmatpush1.msra.mxu0 %v251
        %1011 = vmatprep.subr.mxu0 0.0
        %1012 = vmatpush1.msra.mxu0 %v252
        %1013 = vmatprep.subr.mxu0 0.0
        %1014 = vmatpush1.msra.mxu0 %v253
        %1015 = vmatprep.subr.mxu0 0.0
        %1016 = vmatpush1.msra.mxu0 %v254
        %1017 = vmatprep.subr.mxu0 0.0
        %1018 = vmatpush1.msra.mxu0 %v255
        %1019 = vmatprep.subr.mxu0 0.0
        %1020 = vmatpush1.msra.mxu0 %v256
        %1021 = vmatprep.subr.mxu0 0.0
        %1022 = vmatpush1.msra.mxu0 %v257
        %1023 = vmatprep.subr.mxu0 0.0
        %1024 = vmatpush1.msra.mxu0 %v258
        %1025 = vmatprep.subr.mxu0 0.0
        %1026 = vmatpush1.msra.mxu0 %v259
        %1027 = vmatprep.subr.mxu0 0.0
        %1028 = vmatpush1.msra.mxu0 %v260
        %1029 = vmatprep.subr.mxu0 0.0
        %1030 = vmatpush1.msra.mxu0 %v261
        %1031 = vmatprep.subr.mxu0 0.0
        %1032 = vmatpush1.msra.mxu0 %v262
        %1033 = vmatprep.subr.mxu0 0.0
        %1034 = vmatpush1.msra.mxu0 %v263
        %1035 = vmatprep.subr.mxu0 0.0
        %1036 = vmatpush1.msra.mxu0 %v264
        %1037 = vmatprep.subr.mxu0 0.0
        %1038 = vmatpush1.msra.mxu0 %v265
        %1039 = vmatprep.subr.mxu0 0.0
        %1040 = vmatpush1.msra.mxu0 0.0
        %1041 = vmatprep.subr.mxu0 0.0
        %1042 = vmatpush1.msra.mxu0 0.0
        %1043 = vmatprep.subr.mxu0 0.0
        %1044 = vmatpush1.msra.mxu0 0.0
        %1045 = vmatprep.subr.mxu0 0.0
        %1046 = vmatpush1.msra.mxu0 0.0
        %1047 = vmatprep.subr.mxu0 0.0
        %1048 = vmatpush1.msra.mxu0 0.0
        %1049 = vmatprep.subr.mxu0 0.0
        %1050 = vmatpush1.msra.mxu0 0.0
        %1051 = vmatprep.subr.mxu0 0.0
        %1052 = vmatpush1.msra.mxu0 0.0
        %1053 = vmatprep.subr.mxu0 0.0
        %1054 = vmatpush1.msra.mxu0 0.0
        %1055 = vmatprep.subr.mxu0 0.0
        %1056 = vmatpush1.msra.mxu0 0.0
        %1057 = vmatprep.subr.mxu0 0.0
        %1058 = vmatpush1.msra.mxu0 0.0
        %1059 = vmatprep.subr.mxu0 0.0
        %1060 = vmatpush1.msra.mxu0 0.0
        %1061 = vmatprep.subr.mxu0 0.0
        %1062 = vmatpush1.msra.mxu0 0.0
        %1063 = vmatprep.subr.mxu0 0.0
        %1064 = vmatpush1.msra.mxu0 0.0
        %1065 = vmatprep.subr.mxu0 0.0
        %1066 = vmatpush1.msra.mxu0 0.0
        %1067 = vmatprep.subr.mxu0 0.0
        %1068 = vmatpush1.msra.mxu0 0.0
        %1069 = vmatprep.subr.mxu0 0.0
        %1070 = vmatpush1.msra.mxu0 0.0
        %1071 = vmatprep.mubr.f32.mxu0 0.0
        %1072 = vmatmul.mubr.f32.gmra.mrb[0].mxu0 %v333
        %v1073 = vpop.f32.mrb[0].mxu0
        %v1074 = vadd.f32 %v929, %v1073
        %v1075 = vpop.f32.mrb[0].mxu0
        %1076 = vmatprep.mubr.f32.mxu0 0.0
        %1077 = vmatmul.mubr.f32.gmra.mrb[0].mxu0 %v338
        %v1078 = vpop.f32.mrb[0].mxu0
        %v1079 = vadd.f32 %v934, %v1078
        %v1080 = vpop.f32.mrb[0].mxu0
        %1081 = vmatprep.mubr.f32.mxu0 0.0
        %1082 = vmatmul.mubr.f32.gmra.mrb[0].mxu0 %v343
        %v1083 = vpop.f32.mrb[0].mxu0
        %v1084 = vadd.f32 %v939, %v1083
        %v1085 = vpop.f32.mrb[0].mxu0
        %1086 = vmatprep.mubr.f32.mxu0 0.0
        %1087 = vmatmul.mubr.f32.gmra.mrb[0].mxu0 %v348
        %v1088 = vpop.f32.mrb[0].mxu0
        %v1089 = vadd.f32 %v944, %v1088
        %v1090 = vpop.f32.mrb[0].mxu0
        %1091 = vmatprep.mubr.f32.mxu0 0.0
        %1092 = vmatmul.mubr.f32.gmra.mrb[0].mxu0 %v353
        %v1093 = vpop.f32.mrb[0].mxu0
        %v1094 = vadd.f32 %v949, %v1093
        %v1095 = vpop.f32.mrb[0].mxu0
        %1096 = vmatprep.mubr.f32.mxu0 0.0
        %1097 = vmatmul.mubr.f32.gmra.mrb[0].mxu0 %v358
        %v1098 = vpop.f32.mrb[0].mxu0
        %v1099 = vadd.f32 %v954, %v1098
        %v1100 = vpop.f32.mrb[0].mxu0
        %1101 = vmatprep.mubr.f32.mxu0 0.0
        %1102 = vmatmul.mubr.f32.gmra.mrb[0].mxu0 %v363
        %v1103 = vpop.f32.mrb[0].mxu0
        %v1104 = vadd.f32 %v959, %v1103
        %v1105 = vpop.f32.mrb[0].mxu0
        %1106 = vmatprep.mubr.f32.mxu0 0.0
        %1107 = vmatmul.mubr.f32.gmra.mrb[0].mxu0 %v368
        %v1108 = vpop.f32.mrb[0].mxu0
        %v1109 = vadd.f32 %v964, %v1108
        %v1110 = vpop.f32.mrb[0].mxu0
        %1111 = vmatprep.mubr.f32.mxu0 0.0
        %1112 = vmatmul.mubr.f32.gmra.mrb[0].mxu0 %v373
        %v1113 = vpop.f32.mrb[0].mxu0
        %v1114 = vadd.f32 %v969, %v1113
        %v1115 = vpop.f32.mrb[0].mxu0
        %1116 = vmatprep.mubr.f32.mxu0 0.0
        %1117 = vmatmul.mubr.f32.gmra.mrb[0].mxu0 %v378
        %v1118 = vpop.f32.mrb[0].mxu0
        %v1119 = vadd.f32 %v974, %v1118
        %v1120 = vpop.f32.mrb[0].mxu0
        %1121 = vmatprep.mubr.f32.mxu0 0.0
        %1122 = vmatmul.mubr.f32.gmra.mrb[0].mxu0 %v383
        %v1123 = vpop.f32.mrb[0].mxu0
        %v1124 = vadd.f32 %v979, %v1123
        %v1125 = vpop.f32.mrb[0].mxu0
        %1126 = vmatprep.mubr.f32.mxu0 0.0
        %1127 = vmatmul.mubr.f32.gmra.mrb[0].mxu0 %v388
        %v1128 = vpop.f32.mrb[0].mxu0
        %v1129 = vadd.f32 %v984, %v1128
        %v1130 = vpop.f32.mrb[0].mxu0
        %1131 = vmatprep.mubr.f32.mxu0 0.0
        %1132 = vmatmul.mubr.f32.gmra.mrb[0].mxu0 %v393
        %v1133 = vpop.f32.mrb[0].mxu0
        %v1134 = vadd.f32 %v989, %v1133
        %v1135 = vpop.f32.mrb[0].mxu0
        %1136 = vmatprep.mubr.f32.mxu0 0.0
        %1137 = vmatmul.mubr.f32.gmra.mrb[0].mxu0 %v398
        %v1138 = vpop.f32.mrb[0].mxu0
        %v1139 = vadd.f32 %v994, %v1138
        %v1140 = vpop.f32.mrb[0].mxu0
        %1141 = vmatprep.mubr.f32.mxu0 0.0
        %1142 = vmatmul.mubr.f32.gmra.mrb[0].mxu0 %v403
        %v1143 = vpop.f32.mrb[0].mxu0
        %v1144 = vadd.f32 %v999, %v1143
        %v1145 = vpop.f32.mrb[0].mxu0
        %1146 = vmatprep.mubr.f32.mxu0 0.0
        %1147 = vmatmul.mubr.f32.gmra.mrb[0].mxu0 %v408
        %v1148 = vpop.f32.mrb[0].mxu0
        %v1149 = vadd.f32 %v1004, %v1148
        %v1150 = vpop.f32.mrb[0].mxu0
        %1151 = vdwg.mxu0
        %v1152 = vmul.f32 %v846, %v846
        %v1153 = vmul.f32 %v847, %v847
        %v1154 = vmul.f32 %v848, %v848
        %v1155 = vmul.f32 %v849, %v849
        %v1156 = vmul.f32 %v850, %v850
        %v1157 = vmul.f32 %v851, %v851
        %v1158 = vmul.f32 %v852, %v852
        %v1159 = vmul.f32 %v853, %v853
        %v1160 = vmul.f32 %v854, %v854
        %v1161 = vmul.f32 %v855, %v855
        %v1162 = vmul.f32 %v856, %v856
        %v1163 = vmul.f32 %v857, %v857
        %v1164 = vmul.f32 %v858, %v858
        %v1165 = vmul.f32 %v859, %v859
        %v1166 = vmul.f32 %v860, %v860
        %v1167 = vmul.f32 %v861, %v861
        %v1168 = vmul.f32 %v1074, %v1074
        %v1169 = vmul.f32 %v1079, %v1079
        %v1170 = vmul.f32 %v1084, %v1084
        %v1171 = vmul.f32 %v1089, %v1089
        %v1172 = vmul.f32 %v1094, %v1094
        %v1173 = vmul.f32 %v1099, %v1099
        %v1174 = vmul.f32 %v1104, %v1104
        %v1175 = vmul.f32 %v1109, %v1109
        %v1176 = vmul.f32 %v1114, %v1114
        %v1177 = vmul.f32 %v1119, %v1119
        %v1178 = vmul.f32 %v1124, %v1124
        %v1179 = vmul.f32 %v1129, %v1129
        %v1180 = vmul.f32 %v1134, %v1134
        %v1181 = vmul.f32 %v1139, %v1139
        %v1182 = vmul.f32 %v1144, %v1144
        %v1183 = vmul.f32 %v1149, %v1149
        %v1184 = vadd.f32 %v1152, %v1168
        %v1185 = vadd.f32 %v1153, %v1169
        %v1186 = vadd.f32 %v1154, %v1170
        %v1187 = vadd.f32 %v1155, %v1171
        %v1188 = vadd.f32 %v1156, %v1172
        %v1189 = vadd.f32 %v1157, %v1173
        %v1190 = vadd.f32 %v1158, %v1174
        %v1191 = vadd.f32 %v1159, %v1175
        %v1192 = vadd.f32 %v1160, %v1176
        %v1193 = vadd.f32 %v1161, %v1177
        %v1194 = vadd.f32 %v1162, %v1178
        %v1195 = vadd.f32 %v1163, %v1179
        %v1196 = vadd.f32 %v1164, %v1180
        %v1197 = vadd.f32 %v1165, %v1181
        %v1198 = vadd.f32 %v1166, %v1182
        %v1199 = vadd.f32 %v1167, %v1183
        %1200 = vst [vmem:[%s217] sm:$0xff] %v1184
        %1201 = vst [vmem:[%s217 + $0x8] sm:$0xff] %v1185
        %1202 = vst [vmem:[%s217 + $0x10] sm:$0xff] %v1186
        %1203 = vst [vmem:[%s217 + $0x18] sm:$0xff] %v1187
        %1204 = vst [vmem:[%s217 + $0x20] sm:$0xff] %v1188
        %1205 = vst [vmem:[%s217 + $0x28] sm:$0xff] %v1189
        %1206 = vst [vmem:[%s217 + $0x30] sm:$0xff] %v1190
        %1207 = vst [vmem:[%s217 + $0x38] sm:$0xff] %v1191
        %1208 = vst [vmem:[%s217 + $0x40] sm:$0xff] %v1192
        %1209 = vst [vmem:[%s217 + $0x48] sm:$0xff] %v1193
        %1210 = vst [vmem:[%s217 + $0x50] sm:$0xff] %v1194
        %1211 = vst [vmem:[%s217 + $0x58] sm:$0xff] %v1195
        %1212 = vst [vmem:[%s217 + $0x60] sm:$0xff] %v1196
        %1213 = vst [vmem:[%s217 + $0x68] sm:$0xff] %v1197
        %1214 = vst [vmem:[%s217 + $0x70] sm:$0xff] %v1198
        %1215 = vst [vmem:[%s217 + $0x78] sm:$0xff] %v1199
        %s1216 = sand.u32 %s97, 1
        %s1217 = scalar_lea.sflag [#allocation4], %s1216
        %s1218 = sand.u32 %s97, 1
        %s1219 = smul.addr %s1218, 128
        %s1220 = scalar_lea.vmem [#allocation8], %s1219
        // Predicated region
        $region45: #{tpu_custom_call.1} parent=31 // pred_check
          %p1221 = pneg %p107
        $region46: #{tpu_custom_call.1} parent=31 // pred_check_branch
          %1223 = sbr.rel (%p1221) target = $region48
        $region47: #{tpu_custom_call.1} parent=31 // pred_region
          %s1225 = ssub.s32 2048, 2048
          %1226 = vsyncadd %s1217, %s1225
          %s1227 = smul.addr %s21, 16
          %s1228 = smul.addr %s1227, 128
          %s1229 = scalar_lea.hbm %s3, %s1228
          %s1230 = sshll.u32 %s1220, 4
          %s1231 = int_to_ptr.vmem [resolvable:$true] %s1230
          %1236 = dma.vmem_to_hbm [thread:$0]  %s1231, 2048, %s1229, %s1217, 128, 128, 8
        $region48: #{tpu_custom_call.1} parent=31 // pred_fallthru
          _
      $region32: #{tpu_custom_call.1} parent=5 // pred_fallthru
        _
      %p1237 = scmp.le.s32.totalorder 2, %s16
      // Predicated region
      $region49: #{tpu_custom_call.1} parent=5 // pred_check
        %p1238 = pneg %p1237
      $region50: #{tpu_custom_call.1} parent=5 // pred_check_branch
        %1240 = sbr.rel (%p1238) target = $region52
      $region51: #{tpu_custom_call.1} parent=5 // pred_region
        %s1241 = ssub.s32 %s16, 2
        // Predicated region
        $region53: #{tpu_custom_call.1} parent=51 // pred_check
          %p1242 = pneg %p113
        $region54: #{tpu_custom_call.1} parent=51 // pred_check_branch
          %1244 = sbr.rel (%p1242) target = $region56
        $region55: #{tpu_custom_call.1} parent=51 // pred_region
          %s1245 = sand.u32 %s98, 1
          %s1246 = scalar_lea.sflag [#allocation4], %s1245
          %s1247 = sand.u32 %s98, 1
          %s1248 = smul.addr %s1247, 128
          %s1249 = scalar_lea.vmem [#allocation8], %s1248
          %1250 = dma.done %s1246, 2048
        $region56: #{tpu_custom_call.1} parent=51 // pred_fallthru
          _
      $region52: #{tpu_custom_call.1} parent=5 // pred_fallthru
        _
    $region6: #{tpu_custom_call.1} parent=1 // loop_footer
      %s20 = sadd.s32 1, %s16
    $region7: #{tpu_custom_call.1} parent=1 // loop_footer_branch
      %15 = sbr.rel target = $region3
    $region8: #{tpu_custom_call.1} parent=1 // loop_exit
      _
    %1251 = vsyncpa [#allocation3], 1
    %s1252 = scalar_lea.sflag [#allocation3], 1
    %1253 = vsyncpa %s1252, 1
    %1254 = vsyncpa [#allocation6], 1
    %1255 = vsyncpa [#allocation4], 1
    %s1256 = scalar_lea.sflag [#allocation4], 1
    %1257 = vsyncpa %s1256, 1

</llo_original>
